<compile_context>
chip_gen: v6e
topology: v6e:2x2x1
jax: 0.10.0
libtpu: 0.0.40
codegen_flags: <defaults>
</compile_context>

<pallas_src>
import jax
import jax.numpy as jnp
from jax import lax
from jax.experimental import pallas as pl
from jax.experimental.pallas import tpu as pltpu

_NEG = -1e30                 # finite "minus infinity": exp() underflows to 0
_EPS_SQ = 1e-16              # clamp on squared norm (torch CosineSimilarity eps=1e-8)
_MIN_STATIC_MAX_TEMP = 0.03  # below this, use the online running-max fallback


def _infonce_static_kernel(inv_t_ref, q_i_ref, q_j_ref, k_i_ref, k_j_ref,
                           out_i_ref, out_j_ref, l_i_ref, l_j_ref):
    """Static-max flash logsumexp: valid because every logit <= 1/temperature."""
    q_idx = pl.program_id(0)          # row-tile index (per half)
    k_idx = pl.program_id(1)          # key-tile index (per half)
    nk = pl.num_programs(1)
    tm = q_i_ref.shape[0]
    tn = k_i_ref.shape[0]
    inv_t = inv_t_ref[0, 0]           # static upper bound on every logit

    @pl.when(k_idx == 0)
    def _init():
        l_i_ref[...] = jnp.zeros(l_i_ref.shape, dtype=jnp.float32)
        l_j_ref[...] = jnp.zeros(l_j_ref.shape, dtype=jnp.float32)

    # Four MXU matmuls cover a (2*tm) x (2*tn) patch of the similarity matrix.
    # Queries already carry the 1/temperature factor; keys are unit vectors.
    dn = (((1,), (1,)), ((), ()))     # contract last dims, no transposed copy
    s_ii = lax.dot_general(q_i_ref[...], k_i_ref[...], dn,
                           preferred_element_type=jnp.float32)
    s_ij = lax.dot_general(q_i_ref[...], k_j_ref[...], dn,
                           preferred_element_type=jnp.float32)
    s_ji = lax.dot_general(q_j_ref[...], k_i_ref[...], dn,
                           preferred_element_type=jnp.float32)
    s_jj = lax.dot_general(q_j_ref[...], k_j_ref[...], dn,
                           preferred_element_type=jnp.float32)

    # Cross-half blocks never touch the global diagonal (they hold the positive
    # pairs, which stay inside the logsumexp) — no masking needed.
    # NOTE: if the XLU ever saturates, these row-sums can become p @ ones
    # mat-vecs on the MXU (review item); not needed at current sizes.
    p_ij = jnp.sum(jnp.exp(s_ij - inv_t), axis=-1, keepdims=True)
    p_ji = jnp.sum(jnp.exp(s_ji - inv_t), axis=-1, keepdims=True)

    # Same-half blocks contain diagonal elements only when the row / key index
    # ranges overlap; gate the iota + compare + select work to those tiles.
    row_start = q_idx * tm
    col_start = k_idx * tn
    on_diag = jnp.logical_and(row_start < col_start + tn,
                              col_start < row_start + tm)

    @pl.when(on_diag)
    def _diag_tile():
        row_ids = row_start + lax.broadcasted_iota(jnp.int32, (tm, 1), 0)
        col_ids = col_start + lax.broadcasted_iota(jnp.int32, (1, tn), 1)
        diag = row_ids == col_ids
        p_ii = jnp.sum(jnp.exp(jnp.where(diag, _NEG, s_ii) - inv_t),
                       axis=-1, keepdims=True)
        p_jj = jnp.sum(jnp.exp(jnp.where(diag, _NEG, s_jj) - inv_t),
                       axis=-1, keepdims=True)
        l_i_ref[...] += p_ii + p_ij
        l_j_ref[...] += p_jj + p_ji

    @pl.when(jnp.logical_not(on_diag))
    def _off_diag_tile():
        p_ii = jnp.sum(jnp.exp(s_ii - inv_t), axis=-1, keepdims=True)
        p_jj = jnp.sum(jnp.exp(s_jj - inv_t), axis=-1, keepdims=True)
        l_i_ref[...] += p_ii + p_ij
        l_j_ref[...] += p_jj + p_ji

    @pl.when(k_idx == nk - 1)
    def _finalize():
        out_i_ref[...] = inv_t + jnp.log(l_i_ref[...])
        out_j_ref[...] = inv_t + jnp.log(l_j_ref[...])


def _infonce_online_kernel(inv_t_ref, q_i_ref, q_j_ref, k_i_ref, k_j_ref,
                           out_i_ref, out_j_ref,
                           m_i_ref, l_i_ref, m_j_ref, l_j_ref):
    """Online running-max fallback for pathologically small temperatures."""
    del inv_t_ref  # scores already carry 1/temperature; the max is tracked.
    q_idx = pl.program_id(0)
    k_idx = pl.program_id(1)
    nk = pl.num_programs(1)
    tm = q_i_ref.shape[0]
    tn = k_i_ref.shape[0]

    @pl.when(k_idx == 0)
    def _init():
        m_i_ref[...] = jnp.full(m_i_ref.shape, _NEG, dtype=jnp.float32)
        m_j_ref[...] = jnp.full(m_j_ref.shape, _NEG, dtype=jnp.float32)
        l_i_ref[...] = jnp.zeros(l_i_ref.shape, dtype=jnp.float32)
        l_j_ref[...] = jnp.zeros(l_j_ref.shape, dtype=jnp.float32)

    dn = (((1,), (1,)), ((), ()))
    s_ii = lax.dot_general(q_i_ref[...], k_i_ref[...], dn,
                           preferred_element_type=jnp.float32)
    s_ij = lax.dot_general(q_i_ref[...], k_j_ref[...], dn,
                           preferred_element_type=jnp.float32)
    s_ji = lax.dot_general(q_j_ref[...], k_i_ref[...], dn,
                           preferred_element_type=jnp.float32)
    s_jj = lax.dot_general(q_j_ref[...], k_j_ref[...], dn,
                           preferred_element_type=jnp.float32)

    row_ids = q_idx * tm + lax.broadcasted_iota(jnp.int32, (tm, 1), 0)
    col_ids = k_idx * tn + lax.broadcasted_iota(jnp.int32, (1, tn), 1)
    diag = row_ids == col_ids
    s_ii = jnp.where(diag, _NEG, s_ii)
    s_jj = jnp.where(diag, _NEG, s_jj)

    def _update(m_ref, l_ref, s_a, s_b):
        m_prev = m_ref[...]
        tile_max = jnp.maximum(jnp.max(s_a, axis=-1, keepdims=True),
                               jnp.max(s_b, axis=-1, keepdims=True))
        m_new = jnp.maximum(m_prev, tile_max)
        alpha = jnp.exp(m_prev - m_new)
        p_sum = (jnp.sum(jnp.exp(s_a - m_new), axis=-1, keepdims=True) +
                 jnp.sum(jnp.exp(s_b - m_new), axis=-1, keepdims=True))
        l_ref[...] = alpha * l_ref[...] + p_sum
        m_ref[...] = m_new

    _update(m_i_ref, l_i_ref, s_ii, s_ij)
    _update(m_j_ref, l_j_ref, s_ji, s_jj)

    @pl.when(k_idx == nk - 1)
    def _finalize():
        out_i_ref[...] = m_i_ref[...] + jnp.log(l_i_ref[...])
        out_j_ref[...] = m_j_ref[...] + jnp.log(l_j_ref[...])


def _pick_tile(total: int, target: int, align: int) -> int:
    """Largest divisor of `total` <= target, preferring multiples of `align`.

    bf16 tiles need align=16 (two rows per sublane); f32 tiles use align=8.
    Awkward batch sizes fall back to the largest plain divisor <= target, so a
    huge tile (== total) is only returned when no smaller divisor exists.
    """
    t = min(total, target)
    fallback = None
    for cand in range(t, 0, -1):
        if total % cand == 0:
            if cand % align == 0 or cand == total:
                return cand
            if fallback is None:
                fallback = cand
    return fallback if fallback is not None else total


def info_nce_loss(z_i, z_j, temperature, *, block_rows=512, block_cols=256,
                  use_bf16_matmul=False):
    """Pallas TPU implementation of InfoNCELoss.forward(z_i, z_j, temperature)."""
    assert z_i.ndim == 2 and z_i.shape == z_j.shape
    B, D = z_i.shape
    N = 2 * B
    temperature = float(temperature)
    inv_t = 1.0 / temperature

    # ---- O(N*D) prologue, hoisted out of the O(N^2*D) grid (review item 1) ----
    def _normalize(z):
        x = z.astype(jnp.float32)
        return x * lax.rsqrt(jnp.maximum(jnp.sum(x * x, axis=-1, keepdims=True),
                                         _EPS_SQ))

    n_i = _normalize(z_i)
    n_j = _normalize(z_j)
    # Positive logit cos(z_i[r], z_j[r]) / temp, identical for both halves.
    pos = jnp.sum(n_i * n_j, axis=-1) * inv_t                       # (B,) f32

    op_dtype = jnp.bfloat16 if use_bf16_matmul else jnp.float32
    q_i = (n_i * inv_t).astype(op_dtype)    # 1/temperature folded into queries
    q_j = (n_j * inv_t).astype(op_dtype)
    k_i = n_i.astype(op_dtype)              # keys stay unit vectors
    k_j = n_j.astype(op_dtype)

    align = 16 if use_bf16_matmul else 8
    tm = _pick_tile(B, block_rows, align)   # query rows per half per step
    tn = _pick_tile(B, block_cols, align)   # key columns per half per step
    assert B % tm == 0 and B % tn == 0
    grid = (B // tm, B // tn)               # v7x: keep B//tm >= 2 (and even) so
                                            # both TensorCores get row tiles.

    # Static max is safe because logits are bounded by 1/temperature; fall back
    # to the running-max kernel only for pathologically small temperatures.
    use_static_max = temperature >= _MIN_STATIC_MAX_TEMP
    if use_static_max:
        kernel = _infonce_static_kernel
        scratch = [pltpu.VMEM((tm, 1), jnp.float32)] * 2            # l_i, l_j
    else:
        kernel = _infonce_online_kernel
        scratch = [pltpu.VMEM((tm, 1), jnp.float32)] * 4            # m_i,l_i,m_j,l_j

    inv_t_arr = jnp.full((1, 1), inv_t, dtype=jnp.float32)

    q_spec = pl.BlockSpec((tm, D), lambda qi, ki: (qi, 0))
    k_spec = pl.BlockSpec((tn, D), lambda qi, ki: (ki, 0))
    o_spec = pl.BlockSpec((tm, 1), lambda qi, ki: (qi, 0))

    op_bytes = 2 if use_bf16_matmul else 4
    key_restreams = B // tm                 # keys are re-streamed once per row tile
    cost = pl.CostEstimate(
        flops=2 * N * N * D,
        transcendentals=N * N,
        bytes_accessed=(2 * B * D * op_bytes                        # queries, once
                        + 2 * B * D * op_bytes * key_restreams      # keys re-streamed
                        + 2 * B * 4))                               # per-row lse out

    out_i, out_j = pl.pallas_call(
        kernel,
        grid=grid,
        in_specs=[
            pl.BlockSpec((1, 1), lambda qi, ki: (0, 0),
                         memory_space=pltpu.SMEM),                  # 1/temperature
            q_spec, q_spec,                                         # scaled queries
            k_spec, k_spec,                                         # unit-norm keys
        ],
        out_specs=[o_spec, o_spec],
        out_shape=[jax.ShapeDtypeStruct((B, 1), jnp.float32),
                   jax.ShapeDtypeStruct((B, 1), jnp.float32)],
        scratch_shapes=scratch,
        compiler_params=pltpu.CompilerParams(
            dimension_semantics=("parallel", "arbitrary"),
            vmem_limit_bytes=32 * 1024 * 1024),
        cost_estimate=cost,
    )(inv_t_arr, q_i, q_j, k_i, k_j)

    # Tiny O(N) final reduction; all O(N^2) work stays inside the kernel.
    return (jnp.sum(out_i) + jnp.sum(out_j)
            - 2.0 * jnp.sum(pos)) / jnp.float32(N)


def _reference_loss(z_i, z_j, temperature):
    """Pure-JAX mirror of the PyTorch module, for verification."""
    B = z_i.shape[0]
    N = 2 * B
    z = jnp.concatenate([z_i, z_j], axis=0).astype(jnp.float32)
    norms = jnp.sqrt(jnp.sum(z * z, axis=-1, keepdims=True))
    sim = (z @ z.T) / jnp.maximum(norms * norms.T, 1e-8) / temperature
    idx = jnp.arange(N)
    pos_col = jnp.where(idx < B, idx + B, idx - B)
    pos = sim[idx, pos_col]
    masked = jnp.where(jnp.eye(N, dtype=bool), -jnp.inf, sim)
    m = jnp.max(masked, axis=-1, keepdims=True)
    lse = (m + jnp.log(jnp.sum(jnp.exp(masked - m), axis=-1, keepdims=True)))[:, 0]
    return jnp.sum(lse - pos) / N


if __name__ == "__main__":
    key = jax.random.PRNGKey(0)
    k1, k2, k3, k4, k5, k6, k7, k8 = jax.random.split(key, 8)

    # Case 1: module-sized toy problem (single-tile grid, static-max path).
    z_i = jax.random.normal(k1, (4, 32), dtype=jnp.float32)
    z_j = jax.random.normal(k2, (4, 32), dtype=jnp.float32)
    loss = info_nce_loss(z_i, z_j, 0.5)
    jax.block_until_ready(loss)
    ref = _reference_loss(z_i, z_j, 0.5)
    assert jnp.allclose(loss, ref, rtol=1e-5, atol=1e-5), (loss, ref)

    # Case 2: tiled path, grid (2, 2): exercises diag-tile gating + accumulation.
    z_i2 = jax.random.normal(k3, (16, 128), dtype=jnp.float32)
    z_j2 = jax.random.normal(k4, (16, 128), dtype=jnp.float32)
    loss2 = info_nce_loss(z_i2, z_j2, 0.2, block_rows=8, block_cols=8)
    jax.block_until_ready(loss2)
    ref2 = _reference_loss(z_i2, z_j2, 0.2)
    assert jnp.allclose(loss2, ref2, rtol=1e-4, atol=1e-4), (loss2, ref2)

    # Case 3: pathologically small temperature -> online running-max fallback.
    z_i3 = jax.random.normal(k5, (16, 64), dtype=jnp.float32)
    z_j3 = jax.random.normal(k6, (16, 64), dtype=jnp.float32)
    loss3 = info_nce_loss(z_i3, z_j3, 0.01, block_rows=8, block_cols=8)
    jax.block_until_ready(loss3)
    ref3 = _reference_loss(z_i3, z_j3, 0.01)
    assert jnp.allclose(loss3, ref3, rtol=1e-4, atol=1e-3), (loss3, ref3)

    # Case 4: bf16 MXU inputs (f32 accumulate), 16-aligned tiles, grid (2, 2).
    z_i4 = jax.random.normal(k7, (32, 128), dtype=jnp.float32)
    z_j4 = jax.random.normal(k8, (32, 128), dtype=jnp.float32)
    loss4 = info_nce_loss(z_i4, z_j4, 0.1, block_rows=16, block_cols=16,
                          use_bf16_matmul=True)
    jax.block_until_ready(loss4)
    ref4 = _reference_loss(z_i4, z_j4, 0.1)
    assert jnp.allclose(loss4, ref4, rtol=5e-2, atol=5e-2), (loss4, ref4)

    print("KERNEL_OK")
</pallas_src>

<mosaic_0001>
module attributes {stable_mosaic.version = 11 : i64} {
  func.func @_infonce_static_kernel(%arg0: i32, %arg1: i32, %arg2: memref<1x1xf32, #tpu.memory_space<smem>>, %arg3: memref<4x32xf32, #tpu.memory_space<vmem>>, %arg4: memref<4x32xf32, #tpu.memory_space<vmem>>, %arg5: memref<4x32xf32, #tpu.memory_space<vmem>>, %arg6: memref<4x32xf32, #tpu.memory_space<vmem>>, %arg7: memref<4x1xf32, #tpu.memory_space<vmem>>, %arg8: memref<4x1xf32, #tpu.memory_space<vmem>>, %arg9: memref<4x1xf32, #tpu.memory_space<vmem>>, %arg10: memref<4x1xf32, #tpu.memory_space<vmem>>) attributes {dimension_semantics = [#tpu.dimension_semantics<parallel>, #tpu.dimension_semantics<arbitrary>], iteration_bounds = array<i64: 1, 1>, scalar_prefetch = 0 : i64, scratch_operands = 2 : i64, tpu.core_type = #tpu.core_type<tc>, window_params = [{transform_indices = @transform_0, window_bounds = array<i64: 1, 1>}, {transform_indices = @transform_1, window_bounds = array<i64: 4, 32>}, {transform_indices = @transform_2, window_bounds = array<i64: 4, 32>}, {transform_indices = @transform_3, window_bounds = array<i64: 4, 32>}, {transform_indices = @transform_4, window_bounds = array<i64: 4, 32>}, {transform_indices = @transform_5, window_bounds = array<i64: 4, 1>}, {transform_indices = @transform_6, window_bounds = array<i64: 4, 1>}]} {
    %c0 = arith.constant 0 : index
    %c0_0 = arith.constant 0 : index
    %0 = memref.load %arg2[%c0, %c0_0] : memref<1x1xf32, #tpu.memory_space<smem>>
    %c0_i32 = arith.constant 0 : i32
    %1 = arith.cmpi eq, %arg1, %c0_i32 : i32
    %2 = arith.extui %1 : i1 to i32
    %c0_i32_1 = arith.constant 0 : i32
    %3 = arith.cmpi ne, %2, %c0_i32_1 : i32
    scf.if %3 {
      %cst_30 = arith.constant 0.000000e+00 : f32
      %41 = vector.broadcast %cst_30 : f32 to vector<4x1xf32>
      %c0_31 = arith.constant 0 : index
      %c0_32 = arith.constant 0 : index
      %42 = vector.load %arg9[%c0_31, %c0_32] : memref<4x1xf32, #tpu.memory_space<vmem>>, vector<4x1xf32>
      tpu.vector_store %arg9[%c0_31, %c0_32], %41 {strides = array<i32>} : memref<4x1xf32, #tpu.memory_space<vmem>>, vector<4x1xf32>,
      %cst_33 = arith.constant 0.000000e+00 : f32
      %43 = vector.broadcast %cst_33 : f32 to vector<4x1xf32>
      %c0_34 = arith.constant 0 : index
      %c0_35 = arith.constant 0 : index
      %44 = vector.load %arg10[%c0_34, %c0_35] : memref<4x1xf32, #tpu.memory_space<vmem>>, vector<4x1xf32>
      tpu.vector_store %arg10[%c0_34, %c0_35], %43 {strides = array<i32>} : memref<4x1xf32, #tpu.memory_space<vmem>>, vector<4x1xf32>,
    } else {
    }
    %c0_2 = arith.constant 0 : index
    %c0_3 = arith.constant 0 : index
    %4 = vector.load %arg3[%c0_2, %c0_3] : memref<4x32xf32, #tpu.memory_space<vmem>>, vector<4x32xf32>
    %c0_4 = arith.constant 0 : index
    %c0_5 = arith.constant 0 : index
    %5 = vector.load %arg5[%c0_4, %c0_5] : memref<4x32xf32, #tpu.memory_space<vmem>>, vector<4x32xf32>
    %cst = arith.constant dense<0.000000e+00> : vector<4x4xf32>
    %6 = tpu.matmul %4, %5, %cst {dimension_numbers = #tpu.dot_dimension_numbers<[1], [1], [0], [0], [0, 0, 1, 0], [], []>} : vector<4x32xf32>, vector<4x32xf32>, vector<4x4xf32> -> vector<4x4xf32>
    %c0_6 = arith.constant 0 : index
    %c0_7 = arith.constant 0 : index
    %7 = vector.load %arg3[%c0_6, %c0_7] : memref<4x32xf32, #tpu.memory_space<vmem>>, vector<4x32xf32>
    %c0_8 = arith.constant 0 : index
    %c0_9 = arith.constant 0 : index
    %8 = vector.load %arg6[%c0_8, %c0_9] : memref<4x32xf32, #tpu.memory_space<vmem>>, vector<4x32xf32>
    %cst_10 = arith.constant dense<0.000000e+00> : vector<4x4xf32>
    %9 = tpu.matmul %7, %8, %cst_10 {dimension_numbers = #tpu.dot_dimension_numbers<[1], [1], [0], [0], [0, 0, 1, 0], [], []>} : vector<4x32xf32>, vector<4x32xf32>, vector<4x4xf32> -> vector<4x4xf32>
    %c0_11 = arith.constant 0 : index
    %c0_12 = arith.constant 0 : index
    %10 = vector.load %arg4[%c0_11, %c0_12] : memref<4x32xf32, #tpu.memory_space<vmem>>, vector<4x32xf32>
    %c0_13 = arith.constant 0 : index
    %c0_14 = arith.constant 0 : index
    %11 = vector.load %arg5[%c0_13, %c0_14] : memref<4x32xf32, #tpu.memory_space<vmem>>, vector<4x32xf32>
    %cst_15 = arith.constant dense<0.000000e+00> : vector<4x4xf32>
    %12 = tpu.matmul %10, %11, %cst_15 {dimension_numbers = #tpu.dot_dimension_numbers<[1], [1], [0], [0], [0, 0, 1, 0], [], []>} : vector<4x32xf32>, vector<4x32xf32>, vector<4x4xf32> -> vector<4x4xf32>
    %c0_16 = arith.constant 0 : index
    %c0_17 = arith.constant 0 : index
    %13 = vector.load %arg4[%c0_16, %c0_17] : memref<4x32xf32, #tpu.memory_space<vmem>>, vector<4x32xf32>
    %c0_18 = arith.constant 0 : index
    %c0_19 = arith.constant 0 : index
    %14 = vector.load %arg6[%c0_18, %c0_19] : memref<4x32xf32, #tpu.memory_space<vmem>>, vector<4x32xf32>
    %cst_20 = arith.constant dense<0.000000e+00> : vector<4x4xf32>
    %15 = tpu.matmul %13, %14, %cst_20 {dimension_numbers = #tpu.dot_dimension_numbers<[1], [1], [0], [0], [0, 0, 1, 0], [], []>} : vector<4x32xf32>, vector<4x32xf32>, vector<4x4xf32> -> vector<4x4xf32>
    %16 = vector.broadcast %0 : f32 to vector<4x4xf32>
    %17 = arith.subf %9, %16 : vector<4x4xf32>
    %18 = math.exp %17 : vector<4x4xf32>
    %cst_21 = arith.constant dense<0.000000e+00> : vector<4xf32>
    %19 = vector.multi_reduction <add>, %18, %cst_21 [1] : vector<4x4xf32> to vector<4xf32>
    %20 = vector.shape_cast %19 : vector<4xf32> to vector<4x1xf32>
    %21 = vector.broadcast %0 : f32 to vector<4x4xf32>
    %22 = arith.subf %12, %21 : vector<4x4xf32>
    %23 = math.exp %22 : vector<4x4xf32>
    %cst_22 = arith.constant dense<0.000000e+00> : vector<4xf32>
    %24 = vector.multi_reduction <add>, %23, %cst_22 [1] : vector<4x4xf32> to vector<4xf32>
    %25 = vector.shape_cast %24 : vector<4xf32> to vector<4x1xf32>
    %c4_i32 = arith.constant 4 : i32
    %26 = arith.muli %arg0, %c4_i32 : i32
    %c4_i32_23 = arith.constant 4 : i32
    %27 = arith.muli %arg1, %c4_i32_23 : i32
    %c4_i32_24 = arith.constant 4 : i32
    %28 = arith.addi %27, %c4_i32_24 : i32
    %29 = arith.cmpi slt, %26, %28 : i32
    %c4_i32_25 = arith.constant 4 : i32
    %30 = arith.addi %26, %c4_i32_25 : i32
    %31 = arith.cmpi slt, %27, %30 : i32
    %32 = arith.andi %29, %31 : i1
    %33 = arith.extui %32 : i1 to i32
    %c0_i32_26 = arith.constant 0 : i32
    %34 = arith.cmpi ne, %33, %c0_i32_26 : i32
    scf.if %34 {
      %41 = tpu.iota {dimensions = array<i32: 0>} : vector<4x1xi32>
      %42 = vector.broadcast %26 : i32 to vector<4x1xi32>
      %43 = arith.addi %42, %41 : vector<4x1xi32>
      %44 = tpu.iota {dimensions = array<i32: 1>} : vector<1x4xi32>
      %45 = vector.broadcast %27 : i32 to vector<1x4xi32>
      %46 = arith.addi %45, %44 : vector<1x4xi32>
      %47 = vector.broadcast %43 : vector<4x1xi32> to vector<4x4xi32>
      %48 = vector.broadcast %46 : vector<1x4xi32> to vector<4x4xi32>
      %49 = arith.cmpi eq, %47, %48 : vector<4x4xi32>
      %cst_30 = arith.constant -1.000000e+30 : f32
      %50 = vector.broadcast %cst_30 : f32 to vector<4x4xf32>
      %51 = arith.select %49, %50, %6 : vector<4x4xi1>, vector<4x4xf32>
      %52 = vector.broadcast %0 : f32 to vector<4x4xf32>
      %53 = arith.subf %51, %52 : vector<4x4xf32>
      %54 = math.exp %53 : vector<4x4xf32>
      %cst_31 = arith.constant dense<0.000000e+00> : vector<4xf32>
      %55 = vector.multi_reduction <add>, %54, %cst_31 [1] : vector<4x4xf32> to vector<4xf32>
      %56 = vector.shape_cast %55 : vector<4xf32> to vector<4x1xf32>
      %cst_32 = arith.constant -1.000000e+30 : f32
      %57 = vector.broadcast %cst_32 : f32 to vector<4x4xf32>
      %58 = arith.select %49, %57, %15 : vector<4x4xi1>, vector<4x4xf32>
      %59 = vector.broadcast %0 : f32 to vector<4x4xf32>
      %60 = arith.subf %58, %59 : vector<4x4xf32>
      %61 = math.exp %60 : vector<4x4xf32>
      %cst_33 = arith.constant dense<0.000000e+00> : vector<4xf32>
      %62 = vector.multi_reduction <add>, %61, %cst_33 [1] : vector<4x4xf32> to vector<4xf32>
      %63 = vector.shape_cast %62 : vector<4xf32> to vector<4x1xf32>
      %c0_34 = arith.constant 0 : index
      %c0_35 = arith.constant 0 : index
      %64 = vector.load %arg9[%c0_34, %c0_35] : memref<4x1xf32, #tpu.memory_space<vmem>>, vector<4x1xf32>
      %65 = arith.addf %56, %20 : vector<4x1xf32>
      %66 = arith.addf %64, %65 : vector<4x1xf32>
      %c0_36 = arith.constant 0 : index
      %c0_37 = arith.constant 0 : index
      %67 = vector.load %arg9[%c0_36, %c0_37] : memref<4x1xf32, #tpu.memory_space<vmem>>, vector<4x1xf32>
      tpu.vector_store %arg9[%c0_36, %c0_37], %66 {strides = array<i32>} : memref<4x1xf32, #tpu.memory_space<vmem>>, vector<4x1xf32>,
      %c0_38 = arith.constant 0 : index
      %c0_39 = arith.constant 0 : index
      %68 = vector.load %arg10[%c0_38, %c0_39] : memref<4x1xf32, #tpu.memory_space<vmem>>, vector<4x1xf32>
      %69 = arith.addf %63, %25 : vector<4x1xf32>
      %70 = arith.addf %68, %69 : vector<4x1xf32>
      %c0_40 = arith.constant 0 : index
      %c0_41 = arith.constant 0 : index
      %71 = vector.load %arg10[%c0_40, %c0_41] : memref<4x1xf32, #tpu.memory_space<vmem>>, vector<4x1xf32>
      tpu.vector_store %arg10[%c0_40, %c0_41], %70 {strides = array<i32>} : memref<4x1xf32, #tpu.memory_space<vmem>>, vector<4x1xf32>,
    } else {
    }
    %true = arith.constant true
    %35 = arith.xori %32, %true : i1
    %36 = arith.extui %35 : i1 to i32
    %c0_i32_27 = arith.constant 0 : i32
    %37 = arith.cmpi ne, %36, %c0_i32_27 : i32
    scf.if %37 {
      %41 = vector.broadcast %0 : f32 to vector<4x4xf32>
      %42 = arith.subf %6, %41 : vector<4x4xf32>
      %43 = math.exp %42 : vector<4x4xf32>
      %cst_30 = arith.constant dense<0.000000e+00> : vector<4xf32>
      %44 = vector.multi_reduction <add>, %43, %cst_30 [1] : vector<4x4xf32> to vector<4xf32>
      %45 = vector.shape_cast %44 : vector<4xf32> to vector<4x1xf32>
      %46 = vector.broadcast %0 : f32 to vector<4x4xf32>
      %47 = arith.subf %15, %46 : vector<4x4xf32>
      %48 = math.exp %47 : vector<4x4xf32>
      %cst_31 = arith.constant dense<0.000000e+00> : vector<4xf32>
      %49 = vector.multi_reduction <add>, %48, %cst_31 [1] : vector<4x4xf32> to vector<4xf32>
      %50 = vector.shape_cast %49 : vector<4xf32> to vector<4x1xf32>
      %c0_32 = arith.constant 0 : index
      %c0_33 = arith.constant 0 : index
      %51 = vector.load %arg9[%c0_32, %c0_33] : memref<4x1xf32, #tpu.memory_space<vmem>>, vector<4x1xf32>
      %52 = arith.addf %45, %20 : vector<4x1xf32>
      %53 = arith.addf %51, %52 : vector<4x1xf32>
      %c0_34 = arith.constant 0 : index
      %c0_35 = arith.constant 0 : index
      %54 = vector.load %arg9[%c0_34, %c0_35] : memref<4x1xf32, #tpu.memory_space<vmem>>, vector<4x1xf32>
      tpu.vector_store %arg9[%c0_34, %c0_35], %53 {strides = array<i32>} : memref<4x1xf32, #tpu.memory_space<vmem>>, vector<4x1xf32>,
      %c0_36 = arith.constant 0 : index
      %c0_37 = arith.constant 0 : index
      %55 = vector.load %arg10[%c0_36, %c0_37] : memref<4x1xf32, #tpu.memory_space<vmem>>, vector<4x1xf32>
      %56 = arith.addf %50, %25 : vector<4x1xf32>
      %57 = arith.addf %55, %56 : vector<4x1xf32>
      %c0_38 = arith.constant 0 : index
      %c0_39 = arith.constant 0 : index
      %58 = vector.load %arg10[%c0_38, %c0_39] : memref<4x1xf32, #tpu.memory_space<vmem>>, vector<4x1xf32>
      tpu.vector_store %arg10[%c0_38, %c0_39], %57 {strides = array<i32>} : memref<4x1xf32, #tpu.memory_space<vmem>>, vector<4x1xf32>,
    } else {
    }
    %c0_i32_28 = arith.constant 0 : i32
    %38 = arith.cmpi eq, %arg1, %c0_i32_28 : i32
    %39 = arith.extui %38 : i1 to i32
    %c0_i32_29 = arith.constant 0 : i32
    %40 = arith.cmpi ne, %39, %c0_i32_29 : i32
    scf.if %40 {
      %c0_30 = arith.constant 0 : index
      %c0_31 = arith.constant 0 : index
      %41 = vector.load %arg9[%c0_30, %c0_31] : memref<4x1xf32, #tpu.memory_space<vmem>>, vector<4x1xf32>
      %42 = math.log %41 : vector<4x1xf32>
      %43 = vector.broadcast %0 : f32 to vector<4x1xf32>
      %44 = arith.addf %43, %42 : vector<4x1xf32>
      %c0_32 = arith.constant 0 : index
      %c0_33 = arith.constant 0 : index
      %45 = vector.load %arg7[%c0_32, %c0_33] : memref<4x1xf32, #tpu.memory_space<vmem>>, vector<4x1xf32>
      tpu.vector_store %arg7[%c0_32, %c0_33], %44 {strides = array<i32>} : memref<4x1xf32, #tpu.memory_space<vmem>>, vector<4x1xf32>,
      %c0_34 = arith.constant 0 : index
      %c0_35 = arith.constant 0 : index
      %46 = vector.load %arg10[%c0_34, %c0_35] : memref<4x1xf32, #tpu.memory_space<vmem>>, vector<4x1xf32>
      %47 = math.log %46 : vector<4x1xf32>
      %48 = vector.broadcast %0 : f32 to vector<4x1xf32>
      %49 = arith.addf %48, %47 : vector<4x1xf32>
      %c0_36 = arith.constant 0 : index
      %c0_37 = arith.constant 0 : index
      %50 = vector.load %arg8[%c0_36, %c0_37] : memref<4x1xf32, #tpu.memory_space<vmem>>, vector<4x1xf32>
      tpu.vector_store %arg8[%c0_36, %c0_37], %49 {strides = array<i32>} : memref<4x1xf32, #tpu.memory_space<vmem>>, vector<4x1xf32>,
    } else {
    }
    return
  }
  func.func @transform_0(%arg0: i32, %arg1: i32) -> (i32, i32) {
    %c0_i32 = arith.constant 0 : i32
    %c0_i32_0 = arith.constant 0 : i32
    %c0_i32_1 = arith.constant 0 : i32
    return %c0_i32, %c0_i32_0 : i32, i32
  }
  func.func @transform_1(%arg0: i32, %arg1: i32) -> (i32, i32) {
    %c0_i32 = arith.constant 0 : i32
    %c0_i32_0 = arith.constant 0 : i32
    return %arg0, %c0_i32 : i32, i32
  }
  func.func @transform_2(%arg0: i32, %arg1: i32) -> (i32, i32) {
    %c0_i32 = arith.constant 0 : i32
    %c0_i32_0 = arith.constant 0 : i32
    return %arg0, %c0_i32 : i32, i32
  }
  func.func @transform_3(%arg0: i32, %arg1: i32) -> (i32, i32) {
    %c0_i32 = arith.constant 0 : i32
    %c0_i32_0 = arith.constant 0 : i32
    return %arg1, %c0_i32 : i32, i32
  }
  func.func @transform_4(%arg0: i32, %arg1: i32) -> (i32, i32) {
    %c0_i32 = arith.constant 0 : i32
    %c0_i32_0 = arith.constant 0 : i32
    return %arg1, %c0_i32 : i32, i32
  }
  func.func @transform_5(%arg0: i32, %arg1: i32) -> (i32, i32) {
    %c0_i32 = arith.constant 0 : i32
    %c0_i32_0 = arith.constant 0 : i32
    return %arg0, %c0_i32 : i32, i32
  }
  func.func @transform_6(%arg0: i32, %arg1: i32) -> (i32, i32) {
    %c0_i32 = arith.constant 0 : i32
    %c0_i32_0 = arith.constant 0 : i32
    return %arg0, %c0_i32 : i32, i32
  }
}

</mosaic_0001>

<llo_original>
// kernel: tpu_custom_call.1
$region0: #{tpu_custom_call.1}
  #allocation0 [shape = 'u32[]', space=smem, size = 0x4, offset = 0x4, fixed_abs, tag = 'smem constant byte address 0x4 - core index']
  #allocation1 [shape = 'u32[144,128]{1,0:T(1,128)}', space=vmem, size = 0x12000, scoped, tag = 'internal scratch']
  #allocation2 [shape = 'f32[4,1]{1,0:T(4,128)}', space=vmem, size = 0x800, scoped, tag = 'scratch operand']
  #allocation3 [shape = 'f32[4,1]{1,0:T(4,128)}', space=vmem, size = 0x800, scoped, tag = 'scratch operand']
  #allocation4 [shape = 'f32[1,1]{1,0:T(1,128)S(6)}', space=smem, size = 0x200, scoped, tag = 'scoped memory for tpu_custom_call.1']
  %s0 = inlined_call_operand.<no memory space> [shape: f32[1,1], index: 0, kind: input, shape index: {}]
  %s1 = inlined_call_operand.hbm [shape: f32[4,32], index: 1, kind: input, shape index: {}]
  %s2 = inlined_call_operand.hbm [shape: f32[4,32], index: 2, kind: input, shape index: {}]
  %s3 = inlined_call_operand.vmem [shape: f32[4,32], index: 3, kind: input, shape index: {}]
  %s4 = inlined_call_operand.hbm [shape: f32[4,32], index: 4, kind: input, shape index: {}]
  %s5 = inlined_call_operand.vmem [shape: f32[4,1], index: 5, kind: output, shape index: {0}]
  %s6 = inlined_call_operand.vmem [shape: f32[4,1], index: 6, kind: output, shape index: {1}]
  %7 = xla_tuple %s5, %s6
  %s8 = sld [smem:[#allocation0]]
  $region66: #{tpu_custom_call.1} parent=0
    _
  %s10 = ssub.s32 1, %s8
  %s11 = scalar_select 0, %s10, %s8
  %12 = sst [smem:[#allocation4]] %s0
  $region1: #{tpu_custom_call.1} parent=0
    #allocation5 [shape = 'u8[2048]{0}', space=vmem, size = 0x800, scoped, tag = 'input window, operand 1, single buffered']
    #allocation6 [shape = 's32[1]{0}', space=sflag, size = 0x4, scoped, tag = 'scoped memory for tpu_custom_call.1']
    #allocation7 [shape = 'u8[2048]{0}', space=vmem, size = 0x800, scoped, tag = 'input window, operand 2, single buffered']
    #allocation8 [shape = 's32[1]{0}', space=sflag, size = 0x4, scoped, tag = 'scoped memory for tpu_custom_call.1']
    #allocation9 [shape = 'u8[2048]{0}', space=vmem, size = 0x800, scoped, tag = 'input window, operand 4, single buffered']
    %13 = vsyncpa [#allocation6], 0
    %14 = vsyncpa [#allocation8], 0
    // Predicated region
    $region2: #{tpu_custom_call.1} parent=1 // pred_check
      _
    $region3: #{tpu_custom_call.1} parent=1 // pred_check_branch
      %16 = sbr.rel (0) target = $region5
    $region4: #{tpu_custom_call.1} parent=1 // pred_region
      _
    $region5: #{tpu_custom_call.1} parent=1 // pred_fallthru
      _
    // Predicated region
    $region6: #{tpu_custom_call.1} parent=1 // pred_check
      _
    $region7: #{tpu_custom_call.1} parent=1 // pred_check_branch
      %18 = sbr.rel (0) target = $region9
    $region8: #{tpu_custom_call.1} parent=1 // pred_region
      %s20 = ssub.s32 64, 64
      %21 = vsyncadd [#allocation6], %s20
      %s23 = sshll.u32 [#allocation5], 4
      %s24 = int_to_ptr.vmem [resolvable:$true] %s23
      %26 = dma.hbm_to_vmem [thread:$0]  %s1, 64, %s24, [#allocation6]
    $region9: #{tpu_custom_call.1} parent=1 // pred_fallthru
      _
    // Predicated region
    $region10: #{tpu_custom_call.1} parent=1 // pred_check
      _
    $region11: #{tpu_custom_call.1} parent=1 // pred_check_branch
      %28 = sbr.rel (0) target = $region13
    $region12: #{tpu_custom_call.1} parent=1 // pred_region
      %s30 = ssub.s32 64, 64
      %31 = vsyncadd [#allocation8], %s30
      %s33 = sshll.u32 [#allocation7], 4
      %s34 = int_to_ptr.vmem [resolvable:$true] %s33
      %36 = dma.hbm_to_vmem [thread:$0]  %s2, 64, %s34, [#allocation8]
    $region13: #{tpu_custom_call.1} parent=1 // pred_fallthru
      _
    // Predicated region
    $region14: #{tpu_custom_call.1} parent=1 // pred_check
      _
    $region15: #{tpu_custom_call.1} parent=1 // pred_check_branch
      %38 = sbr.rel (0) target = $region17
    $region16: #{tpu_custom_call.1} parent=1 // pred_region
      _
    $region17: #{tpu_custom_call.1} parent=1 // pred_fallthru
      _
    // Predicated region
    $region18: #{tpu_custom_call.1} parent=1 // pred_check
      _
    $region19: #{tpu_custom_call.1} parent=1 // pred_check_branch
      %40 = sbr.rel (0) target = $region21
    $region20: #{tpu_custom_call.1} parent=1 // pred_region
      %s42 = ssub.s32 64, 64
      %43 = vsyncadd [#allocation8], %s42
      %s45 = sshll.u32 [#allocation9], 4
      %s46 = int_to_ptr.vmem [resolvable:$true] %s45
      %48 = dma.hbm_to_vmem [thread:$0]  %s4, 64, %s46, [#allocation8]
    $region21: #{tpu_custom_call.1} parent=1 // pred_fallthru
      _
    // Predicated region
    $region22: #{tpu_custom_call.1} parent=1 // pred_check
      _
    $region23: #{tpu_custom_call.1} parent=1 // pred_check_branch
      %50 = sbr.rel (0) target = $region25
    $region24: #{tpu_custom_call.1} parent=1 // pred_region
      %51 = dma.done [#allocation6], 64
    $region25: #{tpu_custom_call.1} parent=1 // pred_fallthru
      _
    // Predicated region
    $region26: #{tpu_custom_call.1} parent=1 // pred_check
      _
    $region27: #{tpu_custom_call.1} parent=1 // pred_check_branch
      %53 = sbr.rel (0) target = $region29
    $region28: #{tpu_custom_call.1} parent=1 // pred_region
      %54 = dma.done [#allocation8], 64
    $region29: #{tpu_custom_call.1} parent=1 // pred_fallthru
      _
    // Predicated region
    $region30: #{tpu_custom_call.1} parent=1 // pred_check
      _
    $region31: #{tpu_custom_call.1} parent=1 // pred_check_branch
      %56 = sbr.rel (0) target = $region33
    $region32: #{tpu_custom_call.1} parent=1 // pred_region
      %57 = dma.done [#allocation8], 64
    $region33: #{tpu_custom_call.1} parent=1 // pred_fallthru
      _
    %s58 = sld [smem:[#allocation4]]
    %p59 = scmp.eq.s32.totalorder 0, 0
    // Predicated region
    $region34: #{tpu_custom_call.1} parent=1 // pred_check
      %p60 = pneg %p59
    $region35: #{tpu_custom_call.1} parent=1 // pred_check_branch
      %62 = sbr.rel (%p60) target = $region37
    $region36: #{tpu_custom_call.1} parent=1 // pred_region
      %vm63 = vcmask 3072
      %64 = vst.msk [vmem:[#allocation2] sm:$0xf] %vm63, 0.0
      %65 = vst.msk [vmem:[#allocation3] sm:$0xf] %vm63, 0.0
    $region37: #{tpu_custom_call.1} parent=1 // pred_fallthru
      _
    %v66 = vld [vmem:[#allocation5] sm:$0xf]
    %v67 = vld [vmem:[%s3] sm:$0xf]
    %vm68 = vcmask 261120
    %v70 = vsel %vm68, %v66, 0
    %v73 = vsel %vm68, %v67, 0
    %75 = vmatprep.subr.mxu0 0.0
    %76 = vmatpush1.xpose.msra.mxu0 0.0
    %77 = vmatprep.subr.mxu0 0.0
    %78 = vmatpush1.xpose.msra.mxu0 0.0
    %79 = vmatprep.subr.mxu0 0.0
    %80 = vmatpush1.xpose.msra.mxu0 0.0
    %81 = vmatprep.subr.mxu0 0.0
    %82 = vmatpush1.xpose.msra.mxu0 0.0
    %83 = vmatprep.subr.mxu0 0.0
    %84 = vmatpush1.xpose.msra.mxu0 0.0
    %85 = vmatprep.subr.mxu0 0.0
    %86 = vmatpush1.xpose.msra.mxu0 0.0
    %87 = vmatprep.subr.mxu0 0.0
    %88 = vmatpush1.xpose.msra.mxu0 0.0
    %89 = vmatprep.subr.mxu0 0.0
    %90 = vmatpush1.xpose.msra.mxu0 0.0
    %91 = vmatprep.subr.mxu0 0.0
    %92 = vmatpush1.xpose.msra.mxu0 0.0
    %93 = vmatprep.subr.mxu0 0.0
    %94 = vmatpush1.xpose.msra.mxu0 0.0
    %95 = vmatprep.subr.mxu0 0.0
    %96 = vmatpush1.xpose.msra.mxu0 0.0
    %97 = vmatprep.subr.mxu0 0.0
    %98 = vmatpush1.xpose.msra.mxu0 0.0
    %99 = vmatprep.subr.mxu0 0.0
    %100 = vmatpush1.xpose.msra.mxu0 0.0
    %101 = vmatprep.subr.mxu0 0.0
    %102 = vmatpush1.xpose.msra.mxu0 0.0
    %103 = vmatprep.subr.mxu0 0.0
    %104 = vmatpush1.xpose.msra.mxu0 0.0
    %105 = vmatprep.subr.mxu0 0.0
    %106 = vmatpush1.xpose.msra.mxu0 %v73
    %107 = vmatprep.subr.mxu0 0.0
    %108 = vmatpush2.xpose.msra.mxu0 0.0
    %109 = vmatprep.subr.mxu0 0.0
    %110 = vmatpush2.xpose.msra.mxu0 0.0
    %111 = vmatprep.subr.mxu0 0.0
    %112 = vmatpush2.xpose.msra.mxu0 0.0
    %113 = vmatprep.subr.mxu0 0.0
    %114 = vmatpush2.xpose.msra.mxu0 0.0
    %115 = vmatprep.subr.mxu0 0.0
    %116 = vmatpush2.xpose.msra.mxu0 0.0
    %117 = vmatprep.subr.mxu0 0.0
    %118 = vmatpush2.xpose.msra.mxu0 0.0
    %119 = vmatprep.subr.mxu0 0.0
    %120 = vmatpush2.xpose.msra.mxu0 0.0
    %121 = vmatprep.subr.mxu0 0.0
    %122 = vmatpush2.xpose.msra.mxu0 0.0
    %123 = vmatprep.subr.mxu0 0.0
    %124 = vmatpush2.xpose.msra.mxu0 0.0
    %125 = vmatprep.subr.mxu0 0.0
    %126 = vmatpush2.xpose.msra.mxu0 0.0
    %127 = vmatprep.subr.mxu0 0.0
    %128 = vmatpush2.xpose.msra.mxu0 0.0
    %129 = vmatprep.subr.mxu0 0.0
    %130 = vmatpush2.xpose.msra.mxu0 0.0
    %131 = vmatprep.subr.mxu0 0.0
    %132 = vmatpush2.xpose.msra.mxu0 0.0
    %133 = vmatprep.subr.mxu0 0.0
    %134 = vmatpush2.xpose.msra.mxu0 0.0
    %135 = vmatprep.subr.mxu0 0.0
    %136 = vmatpush2.xpose.msra.mxu0 0.0
    %137 = vmatprep.subr.mxu0 0.0
    %138 = vmatpush2.xpose.msra.mxu0 0.0
    %139 = vmatprep.mubr.f32.mxu0 0.0
    %140 = vmatmul.mubr.f32.gmra.mxu0 %v70
    %v141 = vpop.f32.mrf.mxu0
    %v142 = vadd.f32 0.0, %v141
    %v143 = vpop.f32.mrf.mxu0
    %144 = vdwg.mxu0
    %v145 = vld [vmem:[#allocation9] sm:$0xf]
    %v147 = vsel %vm68, %v145, 0
    %149 = vmatprep.subr.mxu0 0.0
    %150 = vmatpush1.xpose.msra.mxu0 0.0
    %151 = vmatprep.subr.mxu0 0.0
    %152 = vmatpush1.xpose.msra.mxu0 0.0
    %153 = vmatprep.subr.mxu0 0.0
    %154 = vmatpush1.xpose.msra.mxu0 0.0
    %155 = vmatprep.subr.mxu0 0.0
    %156 = vmatpush1.xpose.msra.mxu0 0.0
    %157 = vmatprep.subr.mxu0 0.0
    %158 = vmatpush1.xpose.msra.mxu0 0.0
    %159 = vmatprep.subr.mxu0 0.0
    %160 = vmatpush1.xpose.msra.mxu0 0.0
    %161 = vmatprep.subr.mxu0 0.0
    %162 = vmatpush1.xpose.msra.mxu0 0.0
    %163 = vmatprep.subr.mxu0 0.0
    %164 = vmatpush1.xpose.msra.mxu0 0.0
    %165 = vmatprep.subr.mxu0 0.0
    %166 = vmatpush1.xpose.msra.mxu0 0.0
    %167 = vmatprep.subr.mxu0 0.0
    %168 = vmatpush1.xpose.msra.mxu0 0.0
    %169 = vmatprep.subr.mxu0 0.0
    %170 = vmatpush1.xpose.msra.mxu0 0.0
    %171 = vmatprep.subr.mxu0 0.0
    %172 = vmatpush1.xpose.msra.mxu0 0.0
    %173 = vmatprep.subr.mxu0 0.0
    %174 = vmatpush1.xpose.msra.mxu0 0.0
    %175 = vmatprep.subr.mxu0 0.0
    %176 = vmatpush1.xpose.msra.mxu0 0.0
    %177 = vmatprep.subr.mxu0 0.0
    %178 = vmatpush1.xpose.msra.mxu0 0.0
    %179 = vmatprep.subr.mxu0 0.0
    %180 = vmatpush1.xpose.msra.mxu0 %v147
    %181 = vmatprep.subr.mxu0 0.0
    %182 = vmatpush2.xpose.msra.mxu0 0.0
    %183 = vmatprep.subr.mxu0 0.0
    %184 = vmatpush2.xpose.msra.mxu0 0.0
    %185 = vmatprep.subr.mxu0 0.0
    %186 = vmatpush2.xpose.msra.mxu0 0.0
    %187 = vmatprep.subr.mxu0 0.0
    %188 = vmatpush2.xpose.msra.mxu0 0.0
    %189 = vmatprep.subr.mxu0 0.0
    %190 = vmatpush2.xpose.msra.mxu0 0.0
    %191 = vmatprep.subr.mxu0 0.0
    %192 = vmatpush2.xpose.msra.mxu0 0.0
    %193 = vmatprep.subr.mxu0 0.0
    %194 = vmatpush2.xpose.msra.mxu0 0.0
    %195 = vmatprep.subr.mxu0 0.0
    %196 = vmatpush2.xpose.msra.mxu0 0.0
    %197 = vmatprep.subr.mxu0 0.0
    %198 = vmatpush2.xpose.msra.mxu0 0.0
    %199 = vmatprep.subr.mxu0 0.0
    %200 = vmatpush2.xpose.msra.mxu0 0.0
    %201 = vmatprep.subr.mxu0 0.0
    %202 = vmatpush2.xpose.msra.mxu0 0.0
    %203 = vmatprep.subr.mxu0 0.0
    %204 = vmatpush2.xpose.msra.mxu0 0.0
    %205 = vmatprep.subr.mxu0 0.0
    %206 = vmatpush2.xpose.msra.mxu0 0.0
    %207 = vmatprep.subr.mxu0 0.0
    %208 = vmatpush2.xpose.msra.mxu0 0.0
    %209 = vmatprep.subr.mxu0 0.0
    %210 = vmatpush2.xpose.msra.mxu0 0.0
    %211 = vmatprep.subr.mxu0 0.0
    %212 = vmatpush2.xpose.msra.mxu0 0.0
    %213 = vmatprep.mubr.f32.mxu0 0.0
    %214 = vmatmul.mubr.f32.gmra.mxu0 %v70
    %v215 = vpop.f32.mrf.mxu0
    %v216 = vadd.f32 0.0, %v215
    %v217 = vpop.f32.mrf.mxu0
    %218 = vdwg.mxu0
    %v219 = vld [vmem:[#allocation7] sm:$0xf]
    %v221 = vsel %vm68, %v219, 0
    %223 = vmatprep.subr.mxu0 0.0
    %224 = vmatpush1.xpose.msra.mxu0 0.0
    %225 = vmatprep.subr.mxu0 0.0
    %226 = vmatpush1.xpose.msra.mxu0 0.0
    %227 = vmatprep.subr.mxu0 0.0
    %228 = vmatpush1.xpose.msra.mxu0 0.0
    %229 = vmatprep.subr.mxu0 0.0
    %230 = vmatpush1.xpose.msra.mxu0 0.0
    %231 = vmatprep.subr.mxu0 0.0
    %232 = vmatpush1.xpose.msra.mxu0 0.0
    %233 = vmatprep.subr.mxu0 0.0
    %234 = vmatpush1.xpose.msra.mxu0 0.0
    %235 = vmatprep.subr.mxu0 0.0
    %236 = vmatpush1.xpose.msra.mxu0 0.0
    %237 = vmatprep.subr.mxu0 0.0
    %238 = vmatpush1.xpose.msra.mxu0 0.0
    %239 = vmatprep.subr.mxu0 0.0
    %240 = vmatpush1.xpose.msra.mxu0 0.0
    %241 = vmatprep.subr.mxu0 0.0
    %242 = vmatpush1.xpose.msra.mxu0 0.0
    %243 = vmatprep.subr.mxu0 0.0
    %244 = vmatpush1.xpose.msra.mxu0 0.0
    %245 = vmatprep.subr.mxu0 0.0
    %246 = vmatpush1.xpose.msra.mxu0 0.0
    %247 = vmatprep.subr.mxu0 0.0
    %248 = vmatpush1.xpose.msra.mxu0 0.0
    %249 = vmatprep.subr.mxu0 0.0
    %250 = vmatpush1.xpose.msra.mxu0 0.0
    %251 = vmatprep.subr.mxu0 0.0
    %252 = vmatpush1.xpose.msra.mxu0 0.0
    %253 = vmatprep.subr.mxu0 0.0
    %254 = vmatpush1.xpose.msra.mxu0 %v73
    %255 = vmatprep.subr.mxu0 0.0
    %256 = vmatpush2.xpose.msra.mxu0 0.0
    %257 = vmatprep.subr.mxu0 0.0
    %258 = vmatpush2.xpose.msra.mxu0 0.0
    %259 = vmatprep.subr.mxu0 0.0
    %260 = vmatpush2.xpose.msra.mxu0 0.0
    %261 = vmatprep.subr.mxu0 0.0
    %262 = vmatpush2.xpose.msra.mxu0 0.0
    %263 = vmatprep.subr.mxu0 0.0
    %264 = vmatpush2.xpose.msra.mxu0 0.0
    %265 = vmatprep.subr.mxu0 0.0
    %266 = vmatpush2.xpose.msra.mxu0 0.0
    %267 = vmatprep.subr.mxu0 0.0
    %268 = vmatpush2.xpose.msra.mxu0 0.0
    %269 = vmatprep.subr.mxu0 0.0
    %270 = vmatpush2.xpose.msra.mxu0 0.0
    %271 = vmatprep.subr.mxu0 0.0
    %272 = vmatpush2.xpose.msra.mxu0 0.0
    %273 = vmatprep.subr.mxu0 0.0
    %274 = vmatpush2.xpose.msra.mxu0 0.0
    %275 = vmatprep.subr.mxu0 0.0
    %276 = vmatpush2.xpose.msra.mxu0 0.0
    %277 = vmatprep.subr.mxu0 0.0
    %278 = vmatpush2.xpose.msra.mxu0 0.0
    %279 = vmatprep.subr.mxu0 0.0
    %280 = vmatpush2.xpose.msra.mxu0 0.0
    %281 = vmatprep.subr.mxu0 0.0
    %282 = vmatpush2.xpose.msra.mxu0 0.0
    %283 = vmatprep.subr.mxu0 0.0
    %284 = vmatpush2.xpose.msra.mxu0 0.0
    %285 = vmatprep.subr.mxu0 0.0
    %286 = vmatpush2.xpose.msra.mxu0 0.0
    %287 = vmatprep.mubr.f32.mxu0 0.0
    %288 = vmatmul.mubr.f32.gmra.mxu0 %v221
    %v289 = vpop.f32.mrf.mxu0
    %v290 = vadd.f32 0.0, %v289
    %v291 = vpop.f32.mrf.mxu0
    %292 = vdwg.mxu0
    %293 = vmatprep.subr.mxu0 0.0
    %294 = vmatpush1.xpose.msra.mxu0 0.0
    %295 = vmatprep.subr.mxu0 0.0
    %296 = vmatpush1.xpose.msra.mxu0 0.0
    %297 = vmatprep.subr.mxu0 0.0
    %298 = vmatpush1.xpose.msra.mxu0 0.0
    %299 = vmatprep.subr.mxu0 0.0
    %300 = vmatpush1.xpose.msra.mxu0 0.0
    %301 = vmatprep.subr.mxu0 0.0
    %302 = vmatpush1.xpose.msra.mxu0 0.0
    %303 = vmatprep.subr.mxu0 0.0
    %304 = vmatpush1.xpose.msra.mxu0 0.0
    %305 = vmatprep.subr.mxu0 0.0
    %306 = vmatpush1.xpose.msra.mxu0 0.0
    %307 = vmatprep.subr.mxu0 0.0
    %308 = vmatpush1.xpose.msra.mxu0 0.0
    %309 = vmatprep.subr.mxu0 0.0
    %310 = vmatpush1.xpose.msra.mxu0 0.0
    %311 = vmatprep.subr.mxu0 0.0
    %312 = vmatpush1.xpose.msra.mxu0 0.0
    %313 = vmatprep.subr.mxu0 0.0
    %314 = vmatpush1.xpose.msra.mxu0 0.0
    %315 = vmatprep.subr.mxu0 0.0
    %316 = vmatpush1.xpose.msra.mxu0 0.0
    %317 = vmatprep.subr.mxu0 0.0
    %318 = vmatpush1.xpose.msra.mxu0 0.0
    %319 = vmatprep.subr.mxu0 0.0
    %320 = vmatpush1.xpose.msra.mxu0 0.0
    %321 = vmatprep.subr.mxu0 0.0
    %322 = vmatpush1.xpose.msra.mxu0 0.0
    %323 = vmatprep.subr.mxu0 0.0
    %324 = vmatpush1.xpose.msra.mxu0 %v147
    %325 = vmatprep.subr.mxu0 0.0
    %326 = vmatpush2.xpose.msra.mxu0 0.0
    %327 = vmatprep.subr.mxu0 0.0
    %328 = vmatpush2.xpose.msra.mxu0 0.0
    %329 = vmatprep.subr.mxu0 0.0
    %330 = vmatpush2.xpose.msra.mxu0 0.0
    %331 = vmatprep.subr.mxu0 0.0
    %332 = vmatpush2.xpose.msra.mxu0 0.0
    %333 = vmatprep.subr.mxu0 0.0
    %334 = vmatpush2.xpose.msra.mxu0 0.0
    %335 = vmatprep.subr.mxu0 0.0
    %336 = vmatpush2.xpose.msra.mxu0 0.0
    %337 = vmatprep.subr.mxu0 0.0
    %338 = vmatpush2.xpose.msra.mxu0 0.0
    %339 = vmatprep.subr.mxu0 0.0
    %340 = vmatpush2.xpose.msra.mxu0 0.0
    %341 = vmatprep.subr.mxu0 0.0
    %342 = vmatpush2.xpose.msra.mxu0 0.0
    %343 = vmatprep.subr.mxu0 0.0
    %344 = vmatpush2.xpose.msra.mxu0 0.0
    %345 = vmatprep.subr.mxu0 0.0
    %346 = vmatpush2.xpose.msra.mxu0 0.0
    %347 = vmatprep.subr.mxu0 0.0
    %348 = vmatpush2.xpose.msra.mxu0 0.0
    %349 = vmatprep.subr.mxu0 0.0
    %350 = vmatpush2.xpose.msra.mxu0 0.0
    %351 = vmatprep.subr.mxu0 0.0
    %352 = vmatpush2.xpose.msra.mxu0 0.0
    %353 = vmatprep.subr.mxu0 0.0
    %354 = vmatpush2.xpose.msra.mxu0 0.0
    %355 = vmatprep.subr.mxu0 0.0
    %356 = vmatpush2.xpose.msra.mxu0 0.0
    %357 = vmatprep.mubr.f32.mxu0 0.0
    %358 = vmatmul.mubr.f32.gmra.mxu0 %v221
    %v359 = vpop.f32.mrf.mxu0
    %v360 = vadd.f32 0.0, %v359
    %v361 = vpop.f32.mrf.mxu0
    %362 = vdwg.mxu0
    %v363 = vstv %s58
    %v364 = vsub.f32 %v216, %v363
    %v365 = vmul.f32 %v364, 1.442695
    %v366 = vpow.pop %v365
    %vm367 = vcmask 27648
    %v368 = vsel %vm367, %v366, 0.0
    %369 = vadd.xlane.f32.xlu0 %v368
    %v370 = vpop.xlane.xlu0 %369
    %v371 = vsub.f32 %v290, %v363
    %v372 = vmul.f32 %v371, 1.442695
    %v373 = vpow.pop %v372
    %v374 = vsel %vm367, %v373, 0.0
    %375 = vadd.xlane.f32.xlu0 %v374
    %v376 = vpop.xlane.xlu0 %375
    %s377 = smul.u32 0, 4
    %s378 = smul.u32 0, 4
    %s379 = sadd.s32 %s378, 4
    %p380 = scmp.lt.s32.totalorder %s377, %s379
    %s381 = sadd.s32 %s377, 4
    %p382 = scmp.lt.s32.totalorder %s378, %s381
    %p383 = pnand %p380, %p382
    %p384 = pneg %p383
    // Predicated region
    $region38: #{tpu_custom_call.1} parent=1 // pred_check
      _
    $region39: #{tpu_custom_call.1} parent=1 // pred_check_branch
      %386 = sbr.rel (%p383) target = $region41
    $region40: #{tpu_custom_call.1} parent=1 // pred_region
      %v387 = vlaneseq
      %v388 = vshrl.u32 %v387, 7
      %v389 = vstv %s377
      %v390 = vadd.s32 %v389, %v388
      %v391 = vlaneseq
      %v392 = vand.u32 %v391, 127
      %v393 = vstv %s378
      %v394 = vadd.s32 %v393, %v392
      %vm395 = vcmp.eq.s32.totalorder %v390, %v394
      %v396 = vsel %vm395, -1e+30, %v142
      %v397 = vsub.f32 %v396, %v363
      %v398 = vmul.f32 %v397, 1.442695
      %v399 = vpow.pop %v398
      %v400 = vsel %vm367, %v399, 0.0
      %401 = vadd.xlane.f32.xlu0 %v400
      %v402 = vpop.xlane.xlu0 %401
      %v403 = vsel %vm395, -1e+30, %v360
      %v404 = vsub.f32 %v403, %v363
      %v405 = vmul.f32 %v404, 1.442695
      %v406 = vpow.pop %v405
      %v407 = vsel %vm367, %v406, 0.0
      %408 = vadd.xlane.f32.xlu0 %v407
      %v409 = vpop.xlane.xlu0 %408
      %v410 = vld [vmem:[#allocation2] sm:$0xf]
      %v411 = vadd.f32 %v402, %v370
      %v412 = vadd.f32 %v410, %v411
      %vm413 = vcmask 3072
      %414 = vst.msk [vmem:[#allocation2] sm:$0xf] %vm413, %v412
      %v415 = vld [vmem:[#allocation3] sm:$0xf]
      %v416 = vadd.f32 %v409, %v376
      %v417 = vadd.f32 %v415, %v416
      %418 = vst.msk [vmem:[#allocation3] sm:$0xf] %vm413, %v417
    $region41: #{tpu_custom_call.1} parent=1 // pred_fallthru
      _
    %p419 = pneg %p384
    // Predicated region
    $region42: #{tpu_custom_call.1} parent=1 // pred_check
      _
    $region43: #{tpu_custom_call.1} parent=1 // pred_check_branch
      %421 = sbr.rel (%p384) target = $region45
    $region44: #{tpu_custom_call.1} parent=1 // pred_region
      %v422 = vsub.f32 %v142, %v363
      %v423 = vmul.f32 %v422, 1.442695
      %v424 = vpow.pop %v423
      %v425 = vsel %vm367, %v424, 0.0
      %426 = vadd.xlane.f32.xlu0 %v425
      %v427 = vpop.xlane.xlu0 %426
      %v428 = vsub.f32 %v360, %v363
      %v429 = vmul.f32 %v428, 1.442695
      %v430 = vpow.pop %v429
      %v431 = vsel %vm367, %v430, 0.0
      %432 = vadd.xlane.f32.xlu0 %v431
      %v433 = vpop.xlane.xlu0 %432
      %v434 = vld [vmem:[#allocation2] sm:$0xf]
      %v435 = vadd.f32 %v427, %v370
      %v436 = vadd.f32 %v434, %v435
      %vm437 = vcmask 3072
      %438 = vst.msk [vmem:[#allocation2] sm:$0xf] %vm437, %v436
      %v439 = vld [vmem:[#allocation3] sm:$0xf]
      %v440 = vadd.f32 %v433, %v376
      %v441 = vadd.f32 %v439, %v440
      %442 = vst.msk [vmem:[#allocation3] sm:$0xf] %vm437, %v441
    $region45: #{tpu_custom_call.1} parent=1 // pred_fallthru
      _
    // Predicated region
    $region46: #{tpu_custom_call.1} parent=1 // pred_check
      %p443 = pneg %p59
    $region47: #{tpu_custom_call.1} parent=1 // pred_check_branch
      %445 = sbr.rel (%p443) target = $region49
    $region48: #{tpu_custom_call.1} parent=1 // pred_region
      %v446 = vld [vmem:[#allocation2] sm:$0xf]
      %v447 = vlog2.pop %v446
      %v448 = vmul.f32 %v447, 0.6931472
      %v449 = vadd.f32 %v363, %v448
      %vm450 = vcmask 3072
      %451 = vst.msk [vmem:[%s5] sm:$0xf] %vm450, %v449
      %v452 = vld [vmem:[#allocation3] sm:$0xf]
      %v453 = vlog2.pop %v452
      %v454 = vmul.f32 %v453, 0.6931472
      %v455 = vadd.f32 %v363, %v454
      %456 = vst.msk [vmem:[%s6] sm:$0xf] %vm450, %v455
    $region49: #{tpu_custom_call.1} parent=1 // pred_fallthru
      _
    // Predicated region
    $region50: #{tpu_custom_call.1} parent=1 // pred_check
      _
    $region51: #{tpu_custom_call.1} parent=1 // pred_check_branch
      %458 = sbr.rel (0) target = $region53
    $region52: #{tpu_custom_call.1} parent=1 // pred_region
      _
    $region53: #{tpu_custom_call.1} parent=1 // pred_fallthru
      _
    // Predicated region
    $region54: #{tpu_custom_call.1} parent=1 // pred_check
      _
    $region55: #{tpu_custom_call.1} parent=1 // pred_check_branch
      %460 = sbr.rel (0) target = $region57
    $region56: #{tpu_custom_call.1} parent=1 // pred_region
      _
    $region57: #{tpu_custom_call.1} parent=1 // pred_fallthru
      _
    // Predicated region
    $region58: #{tpu_custom_call.1} parent=1 // pred_check
      _
    $region59: #{tpu_custom_call.1} parent=1 // pred_check_branch
      %462 = sbr.rel (0) target = $region61
    $region60: #{tpu_custom_call.1} parent=1 // pred_region
      _
    $region61: #{tpu_custom_call.1} parent=1 // pred_fallthru
      _
    // Predicated region
    $region62: #{tpu_custom_call.1} parent=1 // pred_check
      _
    $region63: #{tpu_custom_call.1} parent=1 // pred_check_branch
      %464 = sbr.rel (0) target = $region65
    $region64: #{tpu_custom_call.1} parent=1 // pred_region
      _
    $region65: #{tpu_custom_call.1} parent=1 // pred_fallthru
      _
    %465 = vsyncpa [#allocation6], 1
    %466 = vsyncpa [#allocation8], 1

</llo_original>
